<compile_context>
chip_gen: v7x
topology: tpu7x:2x2x1
jax: 0.10.0
libtpu: 0.0.40
codegen_flags: <defaults>
</compile_context>

<pallas_src>
import math

import jax
import jax.numpy as jnp
from jax import lax
from jax.experimental import pallas as pl
from jax.experimental.pallas import tpu as pltpu


# ----------------------------- config -----------------------------------------
class Args:
    num_words_title = 8
    num_words_abstract = 8
    num_words_body = 8
    news_attributes = ["title"]
    embedding_dim = 16          # item_embedding_dim
    word_embedding_dim = 32     # BERT hidden size (stub)


VOCAB = 64
# Sequences per grid step.  8 keeps the toy demo legal ((8,128) sublane rule) and gives a
# multi-step grid; at realistic batch sizes use 32-64 (=256-512 token rows per step).
SEQ_TILE = 8


def _gelu_exact(x):
    # torch.nn.GELU() default = exact erf GELU (kept exact; tanh approx would change numerics).
    return 0.5 * x * (1.0 + lax.erf(x * (1.0 / math.sqrt(2.0))))


# --------------------------- fused Pallas kernel -------------------------------
def _text_path_kernel(im_ref, tok_ref, wh_ref, bh_ref, wf_ref, bf_ref, o_ref):
    """One grid step = SEQ_TILE sequences of the Text_EncoderFFT path.

    im_ref  : (TB*L, 2) int32   merged [token id | attention mask] rows (sequence-major)
    tok_ref : (V, wd)   bf16    token-embedding table (VMEM resident across steps)
    wh_ref  : (wd, wd)  bf16    stub-BERT dense weight      bh_ref : (1, wd) f32 bias
    wf_ref  : (wd, ed)  bf16    Text_EncoderFFT.fc weight   bf_ref : (1, ed) f32 bias
    o_ref   : (TB, ed)  f32     GELU(fc(hidden_states[:, 0]))
    """
    TB, _ = o_ref.shape
    TBL = im_ref.shape[0]
    L = TBL // TB
    V = tok_ref.shape[0]

    im = im_ref[...]                                            # (TBL, 2) int32
    ids = im[:, 0:1]                                            # (TBL, 1)
    msk = im[:, 1:2].astype(jnp.float32)                        # (TBL, 1)

    # Token-embedding gather fused as one-hot @ tok_emb on the MXU, with the attention-mask
    # multiply folded into the one-hot (mask * emb == (mask * onehot) @ emb).
    vocab_iota = lax.broadcasted_iota(jnp.int32, (TBL, V), 1)
    onehot = jnp.where(ids == vocab_iota, msk, 0.0).astype(jnp.bfloat16)   # (TBL, V)
    emb = jnp.dot(onehot, tok_ref[...],
                  preferred_element_type=jnp.float32)           # (TBL, wd) f32

    # CLS-row selection (token 0 of each sequence) hoisted BEFORE the dense layer.
    # Valid only because the stub backbone is per-token (no attention).
    row = lax.broadcasted_iota(jnp.int32, (TB, TBL), 0)
    col = lax.broadcasted_iota(jnp.int32, (TB, TBL), 1)
    sel = (col == row * L).astype(jnp.float32)                  # (TB, TBL)
    cls_emb = jnp.dot(sel, emb, preferred_element_type=jnp.float32)        # (TB, wd)

    # stub BERT dense + exact GELU (bf16 into the MXU, f32 accumulate / elementwise)
    hidden = _gelu_exact(
        jnp.dot(cls_emb.astype(jnp.bfloat16), wh_ref[...],
                preferred_element_type=jnp.float32) + bh_ref[...])         # (TB, wd)

    # Text_EncoderFFT.fc + GELU (fused, no HBM round-trip of the hidden states)
    out = _gelu_exact(
        jnp.dot(hidden.astype(jnp.bfloat16), wf_ref[...],
                preferred_element_type=jnp.float32) + bf_ref[...])         # (TB, ed)
    o_ref[...] = out.astype(o_ref.dtype)


def text_encoder_fft(params, text):
    """Text_EncoderFFT.forward: text = [ids | attention_mask] -> GELU(fc(cls))."""
    B, n = text.shape
    L = n // 2
    ids = lax.slice_in_dim(text, 0, L, axis=1).astype(jnp.int32)        # torch.narrow(.., 0, L)
    mask = lax.slice_in_dim(text, L, 2 * L, axis=1).astype(jnp.int32)   # torch.narrow(.., L, L)

    V, wd = params["tok_emb"].shape
    ed = params["fc_w"].shape[1]

    tb = SEQ_TILE
    n_tiles = pl.cdiv(B, tb)
    Bp = n_tiles * tb
    if Bp != B:                                  # pad batch to a whole number of tiles
        pad = Bp - B
        ids = jnp.pad(ids, ((0, pad), (0, 0)))
        mask = jnp.pad(mask, ((0, pad), (0, 0)))

    # Merge ids + mask into one (Bp*L, 2) int32 block: one input DMA instead of two
    # 1-lane-wide ones.  Layout plumbing only; all compute happens inside the kernel.
    im = jnp.stack([ids, mask], axis=-1).reshape(Bp * L, 2)

    # bf16 MXU operands, f32 biases (kept f32 for the elementwise path).
    tok_bf = params["tok_emb"].astype(jnp.bfloat16)
    wh_bf = params["bert_wh"].astype(jnp.bfloat16)
    wf_bf = params["fc_w"].astype(jnp.bfloat16)
    bh = params["bert_bh"].reshape(1, wd)
    bf = params["fc_b"].reshape(1, ed)

    out = pl.pallas_call(
        _text_path_kernel,
        out_shape=jax.ShapeDtypeStruct((Bp, ed), jnp.float32),
        grid=(n_tiles,),
        in_specs=[
            pl.BlockSpec((tb * L, 2), lambda i: (i, 0)),    # per-step ids|mask tile
            pl.BlockSpec((V, wd), lambda i: (0, 0)),        # weights: VMEM-resident
            pl.BlockSpec((wd, wd), lambda i: (0, 0)),
            pl.BlockSpec((1, wd), lambda i: (0, 0)),
            pl.BlockSpec((wd, ed), lambda i: (0, 0)),
            pl.BlockSpec((1, ed), lambda i: (0, 0)),
        ],
        out_specs=pl.BlockSpec((tb, ed), lambda i: (i, 0)),
        compiler_params=pltpu.CompilerParams(
            dimension_semantics=("parallel",)),              # megacore sharding on v7x
    )(im, tok_bf, wh_bf, bh, wf_bf, bf)
    return out[:B]


# --------------------------- module forward ------------------------------------
def bert_encoder_fft_forward(params, news, args):
    attributes2length = {"title": args.num_words_title * 2,
                         "abstract": args.num_words_abstract * 2,
                         "body": args.num_words_body * 2}
    for k in list(attributes2length.keys()):
        if k not in args.news_attributes:
            attributes2length[k] = 0
    keys = list(attributes2length.keys())
    attributes2start = {k: sum(list(attributes2length.values())[:keys.index(k)])
                        for k in keys}
    newsname = [n for n in set(args.news_attributes) & {"title", "abstract", "body"}]
    text_vectors = [
        text_encoder_fft(
            params,
            lax.slice_in_dim(news, attributes2start[name],
                             attributes2start[name] + attributes2length[name], axis=1))
        for name in newsname
    ]
    if len(text_vectors) == 1:
        final_news_vector = text_vectors[0]
    else:
        final_news_vector = jnp.mean(jnp.stack(text_vectors, axis=1), axis=1)
    return final_news_vector


# ------------------------------ params ------------------------------------------
def init_params(key, args):
    ks = jax.random.split(key, 4)

    def xavier(k, shape):
        fan_in, fan_out = shape
        std = math.sqrt(2.0 / (fan_in + fan_out))
        return std * jax.random.normal(k, shape, dtype=jnp.float32)

    wd, ed = args.word_embedding_dim, args.embedding_dim
    return {
        # synthetic bert_model stub
        "tok_emb": 0.02 * jax.random.normal(ks[0], (VOCAB, wd), jnp.float32),
        "bert_wh": xavier(ks[1], (wd, wd)),
        "bert_bh": jnp.zeros((wd,), jnp.float32),
        # Text_EncoderFFT.fc
        "fc_w": xavier(ks[2], (wd, ed)),
        "fc_b": jnp.zeros((ed,), jnp.float32),
    }


# ------------------------- pure-JAX reference (f32) -------------------------------
def _reference_text_path(params, text):
    B, n = text.shape
    L = n // 2
    ids = text[:, :L]
    mask = text[:, L:].astype(jnp.float32)
    emb = params["tok_emb"][ids] * mask[..., None]                   # (B, L, wd)
    hidden = _gelu_exact(emb @ params["bert_wh"] + params["bert_bh"])
    cls = hidden[:, 0]
    return _gelu_exact(cls @ params["fc_w"] + params["fc_b"])


# ------------------------------- main --------------------------------------------
if __name__ == "__main__":
    args = Args()
    B = 20   # exercises both the multi-step grid (3 tiles) and the batch-padding path

    key = jax.random.PRNGKey(0)
    k_param, k_ids = jax.random.split(key, 2)

    params = init_params(k_param, args)

    ids = jax.random.randint(k_ids, (B, args.num_words_title), 0, VOCAB, dtype=jnp.int32)
    attmask = jnp.ones((B, args.num_words_title), dtype=jnp.int32)
    news = jnp.concatenate([ids, attmask], axis=1)        # [B, 2*num_words_title]

    final_news_vector = bert_encoder_fft_forward(params, news, args)
    jax.block_until_ready(final_news_vector)
    assert final_news_vector.shape == (B, args.embedding_dim)

    ref = _reference_text_path(params, news)
    assert jnp.allclose(final_news_vector, ref, atol=2e-2, rtol=2e-2)

    print("KERNEL_OK")
</pallas_src>

<mosaic_0001>
module attributes {stable_mosaic.version = 11 : i64} {
  func.func @_text_path_kernel(%arg0: i32, %arg1: memref<64x2xi32, #tpu.memory_space<vmem>>, %arg2: memref<64x32xbf16, #tpu.memory_space<vmem>>, %arg3: memref<32x32xbf16, #tpu.memory_space<vmem>>, %arg4: memref<1x32xf32, #tpu.memory_space<vmem>>, %arg5: memref<32x16xbf16, #tpu.memory_space<vmem>>, %arg6: memref<1x16xf32, #tpu.memory_space<vmem>>, %arg7: memref<8x16xf32, #tpu.memory_space<vmem>>) attributes {dimension_semantics = [#tpu.dimension_semantics<parallel>], iteration_bounds = array<i64: 3>, scalar_prefetch = 0 : i64, scratch_operands = 0 : i64, tpu.core_type = #tpu.core_type<tc>, window_params = [{transform_indices = @transform_0, window_bounds = array<i64: 64, 2>}, {pipeline_mode = #tpu.pipeline_mode<synchronous>, transform_indices = @transform_1, window_bounds = array<i64: 64, 32>}, {pipeline_mode = #tpu.pipeline_mode<synchronous>, transform_indices = @transform_2, window_bounds = array<i64: 32, 32>}, {pipeline_mode = #tpu.pipeline_mode<synchronous>, transform_indices = @transform_3, window_bounds = array<i64: 1, 32>}, {pipeline_mode = #tpu.pipeline_mode<synchronous>, transform_indices = @transform_4, window_bounds = array<i64: 32, 16>}, {pipeline_mode = #tpu.pipeline_mode<synchronous>, transform_indices = @transform_5, window_bounds = array<i64: 1, 16>}, {transform_indices = @transform_6, window_bounds = array<i64: 8, 16>}]} {
    %c0 = arith.constant 0 : index
    %c0_0 = arith.constant 0 : index
    %0 = vector.load %arg1[%c0, %c0_0] : memref<64x2xi32, #tpu.memory_space<vmem>>, vector<64x2xi32>
    %1 = vector.extract_strided_slice %0 {offsets = [0, 0], sizes = [64, 1], strides = [1, 1]} : vector<64x2xi32> to vector<64x1xi32>
    %2 = vector.extract_strided_slice %0 {offsets = [0, 1], sizes = [64, 1], strides = [1, 1]} : vector<64x2xi32> to vector<64x1xi32>
    %3 = arith.sitofp %2 : vector<64x1xi32> to vector<64x1xf32>
    %4 = tpu.iota {dimensions = array<i32: 1>} : vector<64x64xi32>
    %5 = vector.broadcast %1 : vector<64x1xi32> to vector<64x64xi32>
    %6 = arith.cmpi eq, %5, %4 : vector<64x64xi32>
    %cst = arith.constant 0.000000e+00 : f32
    %7 = vector.shape_cast %3 : vector<64x1xf32> to vector<64x1xf32>
    %8 = vector.broadcast %7 : vector<64x1xf32> to vector<64x64xf32>
    %9 = vector.broadcast %cst : f32 to vector<64x64xf32>
    %10 = arith.select %6, %8, %9 : vector<64x64xi1>, vector<64x64xf32>
    %11 = arith.truncf %10 : vector<64x64xf32> to vector<64x64xbf16>
    %c0_1 = arith.constant 0 : index
    %c0_2 = arith.constant 0 : index
    %12 = vector.load %arg2[%c0_1, %c0_2] : memref<64x32xbf16, #tpu.memory_space<vmem>>, vector<64x32xbf16>
    %cst_3 = arith.constant dense<0.000000e+00> : vector<64x32xf32>
    %13 = tpu.matmul %11, %12, %cst_3 {dimension_numbers = #tpu.dot_dimension_numbers<[1], [0], [0], [1], [0, 0, 1, 1], [], []>} : vector<64x64xbf16>, vector<64x32xbf16>, vector<64x32xf32> -> vector<64x32xf32>
    %14 = tpu.iota {dimensions = array<i32: 0>} : vector<8x64xi32>
    %15 = tpu.iota {dimensions = array<i32: 1>} : vector<8x64xi32>
    %c8_i32 = arith.constant 8 : i32
    %16 = vector.broadcast %c8_i32 : i32 to vector<8x64xi32>
    %17 = arith.muli %14, %16 : vector<8x64xi32>
    %18 = arith.cmpi eq, %15, %17 : vector<8x64xi32>
    %19 = arith.extui %18 : vector<8x64xi1> to vector<8x64xi32>
    %20 = arith.sitofp %19 : vector<8x64xi32> to vector<8x64xf32>
    %cst_4 = arith.constant dense<0.000000e+00> : vector<8x32xf32>
    %21 = tpu.matmul %20, %13, %cst_4 {dimension_numbers = #tpu.dot_dimension_numbers<[1], [0], [0], [1], [0, 0, 1, 1], [], []>} : vector<8x64xf32>, vector<64x32xf32>, vector<8x32xf32> -> vector<8x32xf32>
    %22 = arith.truncf %21 : vector<8x32xf32> to vector<8x32xbf16>
    %c0_5 = arith.constant 0 : index
    %c0_6 = arith.constant 0 : index
    %23 = vector.load %arg3[%c0_5, %c0_6] : memref<32x32xbf16, #tpu.memory_space<vmem>>, vector<32x32xbf16>
    %cst_7 = arith.constant dense<0.000000e+00> : vector<8x32xf32>
    %24 = tpu.matmul %22, %23, %cst_7 {dimension_numbers = #tpu.dot_dimension_numbers<[1], [0], [0], [1], [0, 0, 1, 1], [], []>} : vector<8x32xbf16>, vector<32x32xbf16>, vector<8x32xf32> -> vector<8x32xf32>
    %c0_8 = arith.constant 0 : index
    %c0_9 = arith.constant 0 : index
    %25 = vector.load %arg4[%c0_8, %c0_9] : memref<1x32xf32, #tpu.memory_space<vmem>>, vector<1x32xf32>
    %26 = vector.broadcast %25 : vector<1x32xf32> to vector<8x32xf32>
    %27 = arith.addf %24, %26 : vector<8x32xf32>
    %cst_10 = arith.constant 5.000000e-01 : f32
    %28 = vector.broadcast %cst_10 : f32 to vector<8x32xf32>
    %29 = arith.mulf %28, %27 : vector<8x32xf32>
    %cst_11 = arith.constant 0.707106769 : f32
    %30 = vector.broadcast %cst_11 : f32 to vector<8x32xf32>
    %31 = arith.mulf %27, %30 : vector<8x32xf32>
    %32 = math.erf %31 : vector<8x32xf32>
    %cst_12 = arith.constant 1.000000e+00 : f32
    %33 = vector.broadcast %cst_12 : f32 to vector<8x32xf32>
    %34 = arith.addf %33, %32 : vector<8x32xf32>
    %35 = arith.mulf %29, %34 : vector<8x32xf32>
    %36 = arith.truncf %35 : vector<8x32xf32> to vector<8x32xbf16>
    %c0_13 = arith.constant 0 : index
    %c0_14 = arith.constant 0 : index
    %37 = vector.load %arg5[%c0_13, %c0_14] : memref<32x16xbf16, #tpu.memory_space<vmem>>, vector<32x16xbf16>
    %cst_15 = arith.constant dense<0.000000e+00> : vector<8x16xf32>
    %38 = tpu.matmul %36, %37, %cst_15 {dimension_numbers = #tpu.dot_dimension_numbers<[1], [0], [0], [1], [0, 0, 1, 1], [], []>} : vector<8x32xbf16>, vector<32x16xbf16>, vector<8x16xf32> -> vector<8x16xf32>
    %c0_16 = arith.constant 0 : index
    %c0_17 = arith.constant 0 : index
    %39 = vector.load %arg6[%c0_16, %c0_17] : memref<1x16xf32, #tpu.memory_space<vmem>>, vector<1x16xf32>
    %40 = vector.broadcast %39 : vector<1x16xf32> to vector<8x16xf32>
    %41 = arith.addf %38, %40 : vector<8x16xf32>
    %cst_18 = arith.constant 5.000000e-01 : f32
    %42 = vector.broadcast %cst_18 : f32 to vector<8x16xf32>
    %43 = arith.mulf %42, %41 : vector<8x16xf32>
    %cst_19 = arith.constant 0.707106769 : f32
    %44 = vector.broadcast %cst_19 : f32 to vector<8x16xf32>
    %45 = arith.mulf %41, %44 : vector<8x16xf32>
    %46 = math.erf %45 : vector<8x16xf32>
    %cst_20 = arith.constant 1.000000e+00 : f32
    %47 = vector.broadcast %cst_20 : f32 to vector<8x16xf32>
    %48 = arith.addf %47, %46 : vector<8x16xf32>
    %49 = arith.mulf %43, %48 : vector<8x16xf32>
    %c0_21 = arith.constant 0 : index
    %c0_22 = arith.constant 0 : index
    %50 = vector.load %arg7[%c0_21, %c0_22] : memref<8x16xf32, #tpu.memory_space<vmem>>, vector<8x16xf32>
    tpu.vector_store %arg7[%c0_21, %c0_22], %49 {strides = array<i32>} : memref<8x16xf32, #tpu.memory_space<vmem>>, vector<8x16xf32>,
    return
  }
  func.func @transform_0(%arg0: i32) -> (i32, i32) {
    %c0_i32 = arith.constant 0 : i32
    %c0_i32_0 = arith.constant 0 : i32
    return %arg0, %c0_i32 : i32, i32
  }
  func.func @transform_1(%arg0: i32) -> (i32, i32) {
    %c0_i32 = arith.constant 0 : i32
    %c0_i32_0 = arith.constant 0 : i32
    %c0_i32_1 = arith.constant 0 : i32
    return %c0_i32, %c0_i32_0 : i32, i32
  }
  func.func @transform_2(%arg0: i32) -> (i32, i32) {
    %c0_i32 = arith.constant 0 : i32
    %c0_i32_0 = arith.constant 0 : i32
    %c0_i32_1 = arith.constant 0 : i32
    return %c0_i32, %c0_i32_0 : i32, i32
  }
  func.func @transform_3(%arg0: i32) -> (i32, i32) {
    %c0_i32 = arith.constant 0 : i32
    %c0_i32_0 = arith.constant 0 : i32
    %c0_i32_1 = arith.constant 0 : i32
    return %c0_i32, %c0_i32_0 : i32, i32
  }
  func.func @transform_4(%arg0: i32) -> (i32, i32) {
    %c0_i32 = arith.constant 0 : i32
    %c0_i32_0 = arith.constant 0 : i32
    %c0_i32_1 = arith.constant 0 : i32
    return %c0_i32, %c0_i32_0 : i32, i32
  }
  func.func @transform_5(%arg0: i32) -> (i32, i32) {
    %c0_i32 = arith.constant 0 : i32
    %c0_i32_0 = arith.constant 0 : i32
    %c0_i32_1 = arith.constant 0 : i32
    return %c0_i32, %c0_i32_0 : i32, i32
  }
  func.func @transform_6(%arg0: i32) -> (i32, i32) {
    %c0_i32 = arith.constant 0 : i32
    %c0_i32_0 = arith.constant 0 : i32
    return %arg0, %c0_i32 : i32, i32
  }
}

</mosaic_0001>

<llo_original>
// kernel: tpu_custom_call.1
$region0: #{tpu_custom_call.1}
  #allocation0 [shape = 'u32[]', space=smem, size = 0x4, offset = 0x4, fixed_abs, tag = 'smem constant byte address 0x4 - core index']
  #allocation1 [shape = 'u32[144,128]{1,0:T(1,128)}', space=vmem, size = 0x12000, scoped, tag = 'internal scratch']
  %s0 = inlined_call_operand.vmem [shape: s32[192,2], index: 0, kind: input, shape index: {}]
  %s1 = inlined_call_operand.vmem [shape: bf16[64,32], index: 1, kind: input, shape index: {}]
  %s2 = inlined_call_operand.vmem [shape: bf16[32,32], index: 2, kind: input, shape index: {}]
  %s3 = inlined_call_operand.vmem [shape: f32[1,32], index: 3, kind: input, shape index: {}]
  %s4 = inlined_call_operand.vmem [shape: bf16[32,16], index: 4, kind: input, shape index: {}]
  %s5 = inlined_call_operand.vmem [shape: f32[1,16], index: 5, kind: input, shape index: {}]
  %s6 = inlined_call_operand.vmem [shape: f32[24,16], index: 6, kind: output, shape index: {}]
  %s7 = sld [smem:[#allocation0]]
  $region57: #{tpu_custom_call.1} parent=0
    _
  %s9 = ssub.s32 1, %s7
  %s10 = scalar_select 0, %s9, %s7
  loop: start=0, step=1, limit=5
  $region2: #{tpu_custom_call.1} parent=0 // loop_pre_header
    _
  $region3: #{tpu_custom_call.1} parent=0 // loop_header
    %s12 = sphi 0, %s16
    %p13 = scmp.ge.s32.totalorder %s12, 5
    %s22 = sphi 0, %s24
    %s25 = sphi 0, %s22
    %s26 = sphi 0, %s25
    %s42 = sphi 0, %s26
    %s46 = sphi 0, %s46
    %s48 = sphi 0, %s46
    %s49 = sphi 0, %s48
    %s63 = sphi 0, %s49
    %s67 = sphi 0, %s67
    %s69 = sphi 0, %s67
    %s70 = sphi 0, %s69
    %s84 = sphi 0, %s70
    %s88 = sphi 0, %s88
    %s90 = sphi 0, %s88
    %s91 = sphi 0, %s90
    %s105 = sphi 0, %s91
    %s109 = sphi 0, %s109
    %s111 = sphi 0, %s109
    %s112 = sphi 0, %s111
    %s126 = sphi 0, %s112
    %s130 = sphi 0, %s130
    %s132 = sphi 0, %s130
    %s133 = sphi 0, %s132
    %s147 = sphi 0, %s133
    %s153 = sphi 0, %s155
    %s156 = sphi 0, %s153
    %s157 = sphi 0, %s156
    %s173 = sphi 0, %s157
  $region4: #{tpu_custom_call.1} parent=0 // loop_header_branch
    %15 = sbr.rel (%p13) target = $region8
  $region5: #{tpu_custom_call.1} parent=0 // loop_body
    %s17 = ssub.s32 %s12, 1
    %s18 = ssub.s32 %s12, 2
    %s19 = sadd.s32 %s12, 1
    %s20 = ssub.s32 %s12, %s19
    %p21 = scmp.eq.s32.totalorder %s20, 0
    %s23 = sadd.s32 %s22, 1
    %s24 = scalar_select %p21, %s22, %s23
    %p27 = pneg %p21
    %p28 = scmp.eq.s32.totalorder %s12, 2
    %p29 = por %p27, %p28
    %p30 = scmp.ne.s32.totalorder %s22, %s25
    %p31 = scmp.eq.s32.totalorder %s12, 0
    %p32 = por %p30, %p31
    %p33 = scmp.ne.s32.totalorder %s22, %s25
    %p34 = scmp.eq.s32.totalorder %s17, 2
    %p35 = por %p33, %p34
    %p36 = scmp.ne.s32.totalorder %s25, %s26
    %p37 = scmp.eq.s32.totalorder %s17, 0
    %p38 = por %p36, %p37
    %p39 = scmp.ne.s32.totalorder %s25, %s26
    %p40 = scmp.eq.s32.totalorder %s18, 2
    %p41 = por %p39, %p40
    %p43 = scmp.ne.s32.totalorder %s26, %s42
    %p44 = scmp.eq.s32.totalorder %s18, 0
    %p45 = por %p43, %p44
    %s47 = sadd.s32 %s46, 1
    %p50 = scmp.eq.s32.totalorder %s12, 2
    %p51 = scmp.ne.s32.totalorder %s46, %s48
    %p52 = scmp.eq.s32.totalorder %s12, 0
    %p53 = por %p51, %p52
    %p54 = scmp.ne.s32.totalorder %s46, %s48
    %p55 = scmp.eq.s32.totalorder %s17, 2
    %p56 = por %p54, %p55
    %p57 = scmp.ne.s32.totalorder %s48, %s49
    %p58 = scmp.eq.s32.totalorder %s17, 0
    %p59 = por %p57, %p58
    %p60 = scmp.ne.s32.totalorder %s48, %s49
    %p61 = scmp.eq.s32.totalorder %s18, 2
    %p62 = por %p60, %p61
    %p64 = scmp.ne.s32.totalorder %s49, %s63
    %p65 = scmp.eq.s32.totalorder %s18, 0
    %p66 = por %p64, %p65
    %s68 = sadd.s32 %s67, 1
    %p71 = scmp.eq.s32.totalorder %s12, 2
    %p72 = scmp.ne.s32.totalorder %s67, %s69
    %p73 = scmp.eq.s32.totalorder %s12, 0
    %p74 = por %p72, %p73
    %p75 = scmp.ne.s32.totalorder %s67, %s69
    %p76 = scmp.eq.s32.totalorder %s17, 2
    %p77 = por %p75, %p76
    %p78 = scmp.ne.s32.totalorder %s69, %s70
    %p79 = scmp.eq.s32.totalorder %s17, 0
    %p80 = por %p78, %p79
    %p81 = scmp.ne.s32.totalorder %s69, %s70
    %p82 = scmp.eq.s32.totalorder %s18, 2
    %p83 = por %p81, %p82
    %p85 = scmp.ne.s32.totalorder %s70, %s84
    %p86 = scmp.eq.s32.totalorder %s18, 0
    %p87 = por %p85, %p86
    %s89 = sadd.s32 %s88, 1
    %p92 = scmp.eq.s32.totalorder %s12, 2
    %p93 = scmp.ne.s32.totalorder %s88, %s90
    %p94 = scmp.eq.s32.totalorder %s12, 0
    %p95 = por %p93, %p94
    %p96 = scmp.ne.s32.totalorder %s88, %s90
    %p97 = scmp.eq.s32.totalorder %s17, 2
    %p98 = por %p96, %p97
    %p99 = scmp.ne.s32.totalorder %s90, %s91
    %p100 = scmp.eq.s32.totalorder %s17, 0
    %p101 = por %p99, %p100
    %p102 = scmp.ne.s32.totalorder %s90, %s91
    %p103 = scmp.eq.s32.totalorder %s18, 2
    %p104 = por %p102, %p103
    %p106 = scmp.ne.s32.totalorder %s91, %s105
    %p107 = scmp.eq.s32.totalorder %s18, 0
    %p108 = por %p106, %p107
    %s110 = sadd.s32 %s109, 1
    %p113 = scmp.eq.s32.totalorder %s12, 2
    %p114 = scmp.ne.s32.totalorder %s109, %s111
    %p115 = scmp.eq.s32.totalorder %s12, 0
    %p116 = por %p114, %p115
    %p117 = scmp.ne.s32.totalorder %s109, %s111
    %p118 = scmp.eq.s32.totalorder %s17, 2
    %p119 = por %p117, %p118
    %p120 = scmp.ne.s32.totalorder %s111, %s112
    %p121 = scmp.eq.s32.totalorder %s17, 0
    %p122 = por %p120, %p121
    %p123 = scmp.ne.s32.totalorder %s111, %s112
    %p124 = scmp.eq.s32.totalorder %s18, 2
    %p125 = por %p123, %p124
    %p127 = scmp.ne.s32.totalorder %s112, %s126
    %p128 = scmp.eq.s32.totalorder %s18, 0
    %p129 = por %p127, %p128
    %s131 = sadd.s32 %s130, 1
    %p134 = scmp.eq.s32.totalorder %s12, 2
    %p135 = scmp.ne.s32.totalorder %s130, %s132
    %p136 = scmp.eq.s32.totalorder %s12, 0
    %p137 = por %p135, %p136
    %p138 = scmp.ne.s32.totalorder %s130, %s132
    %p139 = scmp.eq.s32.totalorder %s17, 2
    %p140 = por %p138, %p139
    %p141 = scmp.ne.s32.totalorder %s132, %s133
    %p142 = scmp.eq.s32.totalorder %s17, 0
    %p143 = por %p141, %p142
    %p144 = scmp.ne.s32.totalorder %s132, %s133
    %p145 = scmp.eq.s32.totalorder %s18, 2
    %p146 = por %p144, %p145
    %p148 = scmp.ne.s32.totalorder %s133, %s147
    %p149 = scmp.eq.s32.totalorder %s18, 0
    %p150 = por %p148, %p149
    %s151 = ssub.s32 %s12, %s19
    %p152 = scmp.eq.s32.totalorder %s151, 0
    %s154 = sadd.s32 %s153, 1
    %s155 = scalar_select %p152, %s153, %s154
    %p158 = pneg %p152
    %p159 = scmp.eq.s32.totalorder %s12, 2
    %p160 = por %p158, %p159
    %p161 = scmp.ne.s32.totalorder %s153, %s156
    %p162 = scmp.eq.s32.totalorder %s12, 0
    %p163 = por %p161, %p162
    %p164 = scmp.ne.s32.totalorder %s153, %s156
    %p165 = scmp.eq.s32.totalorder %s17, 2
    %p166 = por %p164, %p165
    %p167 = scmp.ne.s32.totalorder %s156, %s157
    %p168 = scmp.eq.s32.totalorder %s17, 0
    %p169 = por %p167, %p168
    %p170 = scmp.ne.s32.totalorder %s156, %s157
    %p171 = scmp.eq.s32.totalorder %s18, 2
    %p172 = por %p170, %p171
    %p174 = scmp.ne.s32.totalorder %s157, %s173
    %p175 = scmp.eq.s32.totalorder %s18, 0
    %p176 = por %p174, %p175
    %p177 = scmp.le.s32.totalorder 1, %s12
    %p178 = scmp.lt.s32.totalorder %s12, 4
    %p179 = pnand %p177, %p178
    %p180 = pneg %p179
    // Predicated region
    $region9: #{tpu_custom_call.1} parent=5 // pred_check
      _
    $region10: #{tpu_custom_call.1} parent=5 // pred_check_branch
      %182 = sbr.rel (%p179) target = $region12
    $region11: #{tpu_custom_call.1} parent=5 // pred_region
      %s183 = ssub.s32 %s12, 1
      // Predicated region
      $region13: #{tpu_custom_call.1} parent=11 // pred_check
        %p184 = pneg %p59
      $region14: #{tpu_custom_call.1} parent=11 // pred_check_branch
        %186 = sbr.rel (%p184) target = $region16
      $region15: #{tpu_custom_call.1} parent=11 // pred_region
        _
      $region16: #{tpu_custom_call.1} parent=11 // pred_fallthru
        _
      // Predicated region
      $region17: #{tpu_custom_call.1} parent=11 // pred_check
        %p187 = pneg %p80
      $region18: #{tpu_custom_call.1} parent=11 // pred_check_branch
        %189 = sbr.rel (%p187) target = $region20
      $region19: #{tpu_custom_call.1} parent=11 // pred_region
        _
      $region20: #{tpu_custom_call.1} parent=11 // pred_fallthru
        _
      // Predicated region
      $region21: #{tpu_custom_call.1} parent=11 // pred_check
        %p190 = pneg %p101
      $region22: #{tpu_custom_call.1} parent=11 // pred_check_branch
        %192 = sbr.rel (%p190) target = $region24
      $region23: #{tpu_custom_call.1} parent=11 // pred_region
        _
      $region24: #{tpu_custom_call.1} parent=11 // pred_fallthru
        _
      // Predicated region
      $region25: #{tpu_custom_call.1} parent=11 // pred_check
        %p193 = pneg %p122
      $region26: #{tpu_custom_call.1} parent=11 // pred_check_branch
        %195 = sbr.rel (%p193) target = $region28
      $region27: #{tpu_custom_call.1} parent=11 // pred_region
        _
      $region28: #{tpu_custom_call.1} parent=11 // pred_fallthru
        _
      // Predicated region
      $region29: #{tpu_custom_call.1} parent=11 // pred_check
        %p196 = pneg %p143
      $region30: #{tpu_custom_call.1} parent=11 // pred_check_branch
        %198 = sbr.rel (%p196) target = $region32
      $region31: #{tpu_custom_call.1} parent=11 // pred_region
        _
      $region32: #{tpu_custom_call.1} parent=11 // pred_fallthru
        _
    $region12: #{tpu_custom_call.1} parent=5 // pred_fallthru
      _
    %p199 = scmp.lt.s32.totalorder %s12, 3
    // Predicated region
    $region33: #{tpu_custom_call.1} parent=5 // pred_check
      %p200 = pneg %p199
    $region34: #{tpu_custom_call.1} parent=5 // pred_check_branch
      %202 = sbr.rel (%p200) target = $region36
    $region35: #{tpu_custom_call.1} parent=5 // pred_region
      // Predicated region
      $region37: #{tpu_custom_call.1} parent=35 // pred_check
        %p203 = pneg %p32
      $region38: #{tpu_custom_call.1} parent=35 // pred_check_branch
        %205 = sbr.rel (%p203) target = $region40
      $region39: #{tpu_custom_call.1} parent=35 // pred_region
        %s206 = smul.u32 8, %s12
        %p207 = scmp.lt.s32.totalorder %s206, 23
        %s208 = scalar_select %p207, %s206, 23
        %s209 = smul.addr %s208, 8
        %s210 = scalar_lea.vmem %s0, %s209
        %s211 = smul.u32 8, %s12
      $region40: #{tpu_custom_call.1} parent=35 // pred_fallthru
        _
    $region36: #{tpu_custom_call.1} parent=5 // pred_fallthru
      _
    %p212 = scmp.le.s32.totalorder 1, %s12
    %p213 = scmp.lt.s32.totalorder %s12, 4
    %p214 = pnand %p212, %p213
    %p215 = pneg %p214
    // Predicated region
    $region41: #{tpu_custom_call.1} parent=5 // pred_check
      _
    $region42: #{tpu_custom_call.1} parent=5 // pred_check_branch
      %217 = sbr.rel (%p214) target = $region44
    $region43: #{tpu_custom_call.1} parent=5 // pred_region
      %s218 = ssub.s32 %s12, 1
      %s219 = smul.u32 8, %s17
      %p220 = scmp.lt.s32.totalorder %s219, 23
      %s221 = scalar_select %p220, %s219, 23
      %s222 = smul.addr %s221, 8
      %s223 = scalar_lea.vmem %s0, %s222
      %p224 = pneg %p38
      %p225 = pneg %p35
      %p226 = pneg %p59
      %p227 = pneg %p56
      %p228 = pneg %p80
      %p229 = pneg %p77
      %p230 = pneg %p101
      %p231 = pneg %p98
      %p232 = pneg %p122
      %p233 = pneg %p119
      %p234 = pneg %p143
      %p235 = pneg %p140
      %p236 = pneg %p169
      %p237 = pneg %p166
      %p238 = scmp.lt.s32.totalorder %s17, 2
      %s239 = scalar_select %p238, %s17, 2
      %s240 = smul.addr %s239, 8
      %s241 = scalar_lea.vmem %s6, %s240
      %s242 = smul.u32 8, %s17
      %p243 = scmp.lt.s32.totalorder %s242, 23
      %s244 = scalar_select %p243, %s242, 23
      %s245 = smul.addr %s244, 8
      %s246 = scalar_lea.vmem %s0, %s245
      %s247 = smul.u32 8, %s17
      %p248 = scmp.lt.s32.totalorder %s17, 2
      %s249 = scalar_select %p248, %s17, 2
      %s250 = smul.addr %s249, 8
      %s251 = scalar_lea.vmem %s6, %s250
      %v253 = vld [vmem:[%s246] sm:$0xff]
      %v254 = vld [vmem:[%s246 + $0x8] sm:$0xff]
      %v255 = vld [vmem:[%s246 + $0x10] sm:$0xff]
      %v256 = vld [vmem:[%s246 + $0x18] sm:$0xff]
      %v257 = vld [vmem:[%s246 + $0x20] sm:$0xff]
      %v258 = vld [vmem:[%s246 + $0x28] sm:$0xff]
      %v259 = vld [vmem:[%s246 + $0x30] sm:$0xff]
      %v260 = vld [vmem:[%s246 + $0x38] sm:$0xff]
      %v261 = vcvt.s32.f32 %v253
      %v262 = vcvt.s32.f32 %v254
      %v263 = vcvt.s32.f32 %v255
      %v264 = vcvt.s32.f32 %v256
      %v265 = vcvt.s32.f32 %v257
      %v266 = vcvt.s32.f32 %v258
      %v267 = vcvt.s32.f32 %v259
      %v268 = vcvt.s32.f32 %v260
      %v269 = vlaneseq
      %v270 = vand.u32 %v269, 127
      %271 = vset.pattern.permute.xlu0 0
      %272 = vperm.xlu0 %271, %v253
      %v273 = vpop.permute.xlu0 %272
      %274 = vset.pattern.permute.xlu0 0
      %275 = vperm.xlu0 %274, %v254
      %v276 = vpop.permute.xlu0 %275
      %277 = vset.pattern.permute.xlu0 0
      %278 = vperm.xlu0 %277, %v255
      %v279 = vpop.permute.xlu0 %278
      %280 = vset.pattern.permute.xlu0 0
      %281 = vperm.xlu0 %280, %v256
      %v282 = vpop.permute.xlu0 %281
      %283 = vset.pattern.permute.xlu0 0
      %284 = vperm.xlu0 %283, %v257
      %v285 = vpop.permute.xlu0 %284
      %286 = vset.pattern.permute.xlu0 0
      %287 = vperm.xlu0 %286, %v258
      %v288 = vpop.permute.xlu0 %287
      %289 = vset.pattern.permute.xlu0 0
      %290 = vperm.xlu0 %289, %v259
      %v291 = vpop.permute.xlu0 %290
      %292 = vset.pattern.permute.xlu0 0
      %293 = vperm.xlu0 %292, %v260
      %v294 = vpop.permute.xlu0 %293
      %vm295 = vcmp.eq.s32.totalorder %v273, %v270
      %vm296 = vcmp.eq.s32.totalorder %v276, %v270
      %vm297 = vcmp.eq.s32.totalorder %v279, %v270
      %vm298 = vcmp.eq.s32.totalorder %v282, %v270
      %vm299 = vcmp.eq.s32.totalorder %v285, %v270
      %vm300 = vcmp.eq.s32.totalorder %v288, %v270
      %vm301 = vcmp.eq.s32.totalorder %v291, %v270
      %vm302 = vcmp.eq.s32.totalorder %v294, %v270
      %304 = vset.pattern.permute.xlu0 1
      %305 = vperm.xlu0 %304, %v261
      %v306 = vpop.permute.xlu0 %305
      %309 = vset.pattern.permute.xlu0 1
      %310 = vperm.xlu0 %309, %v262
      %v311 = vpop.permute.xlu0 %310
      %314 = vset.pattern.permute.xlu0 1
      %315 = vperm.xlu0 %314, %v263
      %v316 = vpop.permute.xlu0 %315
      %319 = vset.pattern.permute.xlu0 1
      %320 = vperm.xlu0 %319, %v264
      %v321 = vpop.permute.xlu0 %320
      %324 = vset.pattern.permute.xlu0 1
      %325 = vperm.xlu0 %324, %v265
      %v326 = vpop.permute.xlu0 %325
      %329 = vset.pattern.permute.xlu0 1
      %330 = vperm.xlu0 %329, %v266
      %v331 = vpop.permute.xlu0 %330
      %334 = vset.pattern.permute.xlu0 1
      %335 = vperm.xlu0 %334, %v267
      %v336 = vpop.permute.xlu0 %335
      %339 = vset.pattern.permute.xlu0 1
      %340 = vperm.xlu0 %339, %v268
      %v341 = vpop.permute.xlu0 %340
      %v343 = vsel %vm295, %v306, 0.0
      %v344 = vsel %vm296, %v311, 0.0
      %v345 = vsel %vm297, %v316, 0.0
      %v346 = vsel %vm298, %v321, 0.0
      %v347 = vsel %vm299, %v326, 0.0
      %v348 = vsel %vm300, %v331, 0.0
      %v349 = vsel %vm301, %v336, 0.0
      %v350 = vsel %vm302, %v341, 0.0
      %v351 = vpack.c.bf16 %v344, %v343
      %v352 = vpack.c.bf16 %v346, %v345
      %v353 = vpack.c.bf16 %v348, %v347
      %v354 = vpack.c.bf16 %v350, %v349
      %v355 = vld [vmem:[%s1] sm:$0xf]
      %v356 = vld [vmem:[%s1 + $0x4] sm:$0xf]
      %v357 = vld [vmem:[%s1 + $0x8] sm:$0xf]
      %v358 = vld [vmem:[%s1 + $0xc] sm:$0xf]
      %v359 = vld [vmem:[%s1 + $0x10] sm:$0xf]
      %v360 = vld [vmem:[%s1 + $0x14] sm:$0xf]
      %v361 = vld [vmem:[%s1 + $0x18] sm:$0xf]
      %v362 = vld [vmem:[%s1 + $0x1c] sm:$0xf]
      %v371 = vunpack.c.l.b16 %v355
      %v372 = vunpack.c.l.b16 %v356
      %v373 = vunpack.c.l.b16 %v357
      %v374 = vunpack.c.l.b16 %v358
      %v375 = vunpack.c.l.b16 %v359
      %v376 = vunpack.c.l.b16 %v360
      %v377 = vunpack.c.l.b16 %v361
      %v378 = vunpack.c.l.b16 %v362
      %v379 = vpack.c.b16 %v372, %v371
      %v380 = vpack.c.b16 %v374, %v373
      %v381 = vpack.c.b16 %v376, %v375
      %v382 = vpack.c.b16 %v378, %v377
      %vm387 = vcmask 523264
      %v389 = vsel %vm387, %v351, 0
      %v392 = vsel %vm387, %v352, 0
      %v395 = vsel %vm387, %v353, 0
      %v398 = vsel %vm387, %v354, 0
      %400 = vmatprep.subr.bf16.mxu0 0
      %401 = vmatpush1.bf16.msra.mxu0 %v379
      %402 = vmatprep.subr.bf16.mxu0 0
      %403 = vmatpush1.bf16.msra.mxu0 %v380
      %404 = vmatprep.subr.bf16.mxu0 0
      %405 = vmatpush1.bf16.msra.mxu0 %v381
      %406 = vmatprep.subr.bf16.mxu0 0
      %407 = vmatpush1.bf16.msra.mxu0 %v382
      %408 = vmatprep.subr.bf16.mxu0 0
      %409 = vmatpush1.bf16.msra.mxu0 0
      %410 = vmatprep.subr.bf16.mxu0 0
      %411 = vmatpush1.bf16.msra.mxu0 0
      %412 = vmatprep.subr.bf16.mxu0 0
      %413 = vmatpush1.bf16.msra.mxu0 0
      %414 = vmatprep.subr.bf16.mxu0 0
      %415 = vmatpush1.bf16.msra.mxu0 0
      %416 = vmatprep.subr.bf16.mxu0 0
      %417 = vmatpush1.bf16.msra.mxu0 0
      %418 = vmatprep.subr.bf16.mxu0 0
      %419 = vmatpush1.bf16.msra.mxu0 0
      %420 = vmatprep.subr.bf16.mxu0 0
      %421 = vmatpush1.bf16.msra.mxu0 0
      %422 = vmatprep.subr.bf16.mxu0 0
      %423 = vmatpush1.bf16.msra.mxu0 0
      %424 = vmatprep.subr.bf16.mxu0 0
      %425 = vmatpush1.bf16.msra.mxu0 0
      %426 = vmatprep.subr.bf16.mxu0 0
      %427 = vmatpush1.bf16.msra.mxu0 0
      %428 = vmatprep.subr.bf16.mxu0 0
      %429 = vmatpush1.bf16.msra.mxu0 0
      %430 = vmatprep.subr.bf16.mxu0 0
      %431 = vmatpush1.bf16.msra.mxu0 0
      %432 = vmatprep.mubr.bf16.mxu0 0
      %433 = vmatmul.mubr.bf16.gmra.mrb[0].mxu0 %v389
      %v434 = vpop.f32.mrb[0].mxu0
      %v435 = vadd.f32 0.0, %v434
      %v436 = vpop.f32.mrb[0].mxu0
      %v437 = vpop.f32.mrb[0].mxu0
      %v438 = vadd.f32 0.0, %v437
      %v439 = vpop.f32.mrb[0].mxu0
      %440 = vmatprep.mubr.bf16.mxu0 0
      %441 = vmatmul.mubr.bf16.gmra.mrb[0].mxu0 %v392
      %v442 = vpop.f32.mrb[0].mxu0
      %v443 = vadd.f32 0.0, %v442
      %v444 = vpop.f32.mrb[0].mxu0
      %v445 = vpop.f32.mrb[0].mxu0
      %v446 = vadd.f32 0.0, %v445
      %v447 = vpop.f32.mrb[0].mxu0
      %448 = vmatprep.mubr.bf16.mxu0 0
      %449 = vmatmul.mubr.bf16.gmra.mrb[0].mxu0 %v395
      %v450 = vpop.f32.mrb[0].mxu0
      %v451 = vadd.f32 0.0, %v450
      %v452 = vpop.f32.mrb[0].mxu0
      %v453 = vpop.f32.mrb[0].mxu0
      %v454 = vadd.f32 0.0, %v453
      %v455 = vpop.f32.mrb[0].mxu0
      %456 = vmatprep.mubr.bf16.mxu0 0
      %457 = vmatmul.mubr.bf16.gmra.mrb[0].mxu0 %v398
      %v458 = vpop.f32.mrb[0].mxu0
      %v459 = vadd.f32 0.0, %v458
      %v460 = vpop.f32.mrb[0].mxu0
      %v461 = vpop.f32.mrb[0].mxu0
      %v462 = vadd.f32 0.0, %v461
      %v463 = vpop.f32.mrb[0].mxu0
      %464 = vdwg.mxu0
      %v465 = vlaneseq
      %v466 = vshrl.u32 %v465, 7
      %v467 = vmul.u32 %v466, 8
      %vm468 = vcmp.eq.s32.totalorder %v270, %v467
      %v469 = vsel %vm468, 1, 0
      %v470 = vcvt.s32.f32 %v469
      %v472 = vsel %vm387, %v470, 0
      %474 = vmatprep.subr.mxu0 0.0
      %475 = vmatpush1.msra.mxu0 %v435
      %476 = vmatprep.subr.mxu0 0.0
      %477 = vmatpush1.msra.mxu0 %v438
      %478 = vmatprep.subr.mxu0 0.0
      %479 = vmatpush1.msra.mxu0 %v443
      %480 = vmatprep.subr.mxu0 0.0
      %481 = vmatpush1.msra.mxu0 %v446
      %482 = vmatprep.subr.mxu0 0.0
      %483 = vmatpush1.msra.mxu0 %v451
      %484 = vmatprep.subr.mxu0 0.0
      %485 = vmatpush1.msra.mxu0 %v454
      %486 = vmatprep.subr.mxu0 0.0
      %487 = vmatpush1.msra.mxu0 %v459
      %488 = vmatprep.subr.mxu0 0.0
      %489 = vmatpush1.msra.mxu0 %v462
      %490 = vmatprep.subr.mxu0 0.0
      %491 = vmatpush1.msra.mxu0 0.0
      %492 = vmatprep.subr.mxu0 0.0
      %493 = vmatpush1.msra.mxu0 0.0
      %494 = vmatprep.subr.mxu0 0.0
      %495 = vmatpush1.msra.mxu0 0.0
      %496 = vmatprep.subr.mxu0 0.0
      %497 = vmatpush1.msra.mxu0 0.0
      %498 = vmatprep.subr.mxu0 0.0
      %499 = vmatpush1.msra.mxu0 0.0
      %500 = vmatprep.subr.mxu0 0.0
      %501 = vmatpush1.msra.mxu0 0.0
      %502 = vmatprep.subr.mxu0 0.0
      %503 = vmatpush1.msra.mxu0 0.0
      %504 = vmatprep.subr.mxu0 0.0
      %505 = vmatpush1.msra.mxu0 0.0
      %506 = vmatprep.subr.mxu0 0.0
      %507 = vmatpush1.msra.mxu0 0.0
      %508 = vmatprep.subr.mxu0 0.0
      %509 = vmatpush1.msra.mxu0 0.0
      %510 = vmatprep.subr.mxu0 0.0
      %511 = vmatpush1.msra.mxu0 0.0
      %512 = vmatprep.subr.mxu0 0.0
      %513 = vmatpush1.msra.mxu0 0.0
      %514 = vmatprep.subr.mxu0 0.0
      %515 = vmatpush1.msra.mxu0 0.0
      %516 = vmatprep.subr.mxu0 0.0
      %517 = vmatpush1.msra.mxu0 0.0
      %518 = vmatprep.subr.mxu0 0.0
      %519 = vmatpush1.msra.mxu0 0.0
      %520 = vmatprep.subr.mxu0 0.0
      %521 = vmatpush1.msra.mxu0 0.0
      %522 = vmatprep.subr.mxu0 0.0
      %523 = vmatpush1.msra.mxu0 0.0
      %524 = vmatprep.subr.mxu0 0.0
      %525 = vmatpush1.msra.mxu0 0.0
      %526 = vmatprep.subr.mxu0 0.0
      %527 = vmatpush1.msra.mxu0 0.0
      %528 = vmatprep.subr.mxu0 0.0
      %529 = vmatpush1.msra.mxu0 0.0
      %530 = vmatprep.subr.mxu0 0.0
      %531 = vmatpush1.msra.mxu0 0.0
      %532 = vmatprep.subr.mxu0 0.0
      %533 = vmatpush1.msra.mxu0 0.0
      %534 = vmatprep.subr.mxu0 0.0
      %535 = vmatpush1.msra.mxu0 0.0
      %536 = vmatprep.subr.mxu0 0.0
      %537 = vmatpush1.msra.mxu0 0.0
      %538 = vmatprep.mubr.f32.mxu0 0.0
      %539 = vmatmul.mubr.f32.gmra.mrb[0].mxu0 %v472
      %v540 = vpop.f32.mrb[0].mxu0
      %v541 = vadd.f32 0.0, %v540
      %v542 = vpop.f32.mrb[0].mxu0
      %543 = vdwg.mxu0
      %v544 = vpack.c.bf16 %v541, %v541
      %v545 = vld [vmem:[%s2] sm:$0xf]
      %v546 = vld [vmem:[%s2 + $0x4] sm:$0xf]
      %v547 = vld [vmem:[%s2 + $0x8] sm:$0xf]
      %v548 = vld [vmem:[%s2 + $0xc] sm:$0xf]
      %v549 = vld [vmem:[%s3] sm:$0x1]
      %v551 = vlaneseq
      %v552 = vshrl.u32 %v551, 7
      %v553 = vsub.s32 0, %v552
      %v554 = vrot.slane %v549, %v553
      %v560 = vunpack.c.l.b16 %v545
      %v561 = vunpack.c.l.b16 %v546
      %v562 = vunpack.c.l.b16 %v547
      %v563 = vunpack.c.l.b16 %v548
      %v564 = vpack.c.b16 %v561, %v560
      %v565 = vpack.c.b16 %v563, %v562
      %vm568 = vcmask 261120
      %v570 = vsel %vm568, %v544, 0
      %572 = vmatprep.subr.bf16.mxu0 0
      %573 = vmatpush1.bf16.msra.mxu0 %v564
      %574 = vmatprep.subr.bf16.mxu0 0
      %575 = vmatpush1.bf16.msra.mxu0 %v565
      %576 = vmatprep.subr.bf16.mxu0 0
      %577 = vmatpush1.bf16.msra.mxu0 0
      %578 = vmatprep.subr.bf16.mxu0 0
      %579 = vmatpush1.bf16.msra.mxu0 0
      %580 = vmatprep.subr.bf16.mxu0 0
      %581 = vmatpush1.bf16.msra.mxu0 0
      %582 = vmatprep.subr.bf16.mxu0 0
      %583 = vmatpush1.bf16.msra.mxu0 0
      %584 = vmatprep.subr.bf16.mxu0 0
      %585 = vmatpush1.bf16.msra.mxu0 0
      %586 = vmatprep.subr.bf16.mxu0 0
      %587 = vmatpush1.bf16.msra.mxu0 0
      %588 = vmatprep.subr.bf16.mxu0 0
      %589 = vmatpush1.bf16.msra.mxu0 0
      %590 = vmatprep.subr.bf16.mxu0 0
      %591 = vmatpush1.bf16.msra.mxu0 0
      %592 = vmatprep.subr.bf16.mxu0 0
      %593 = vmatpush1.bf16.msra.mxu0 0
      %594 = vmatprep.subr.bf16.mxu0 0
      %595 = vmatpush1.bf16.msra.mxu0 0
      %596 = vmatprep.subr.bf16.mxu0 0
      %597 = vmatpush1.bf16.msra.mxu0 0
      %598 = vmatprep.subr.bf16.mxu0 0
      %599 = vmatpush1.bf16.msra.mxu0 0
      %600 = vmatprep.subr.bf16.mxu0 0
      %601 = vmatpush1.bf16.msra.mxu0 0
      %602 = vmatprep.subr.bf16.mxu0 0
      %603 = vmatpush1.bf16.msra.mxu0 0
      %604 = vmatprep.mubr.bf16.mxu0 0
      %605 = vmatmul.mubr.bf16.gmra.mrb[0].mxu0 %v570
      %v606 = vpop.f32.mrb[0].mxu0
      %v607 = vadd.f32 %v554, %v606
      %v608 = vpop.f32.mrb[0].mxu0
      %v609 = vpop.f32.mrb[0].mxu0
      %v610 = vpop.f32.mrb[0].mxu0
      %611 = vdwg.mxu0
      %v612 = vmul.f32 %v607, 0.5
      %v613 = vmul.f32 %v607, 0.70710677
      %v614 = verf.f32.pop %v613
      %v615 = vadd.f32 %v614, 1.0
      %v616 = vmul.f32 %v612, %v615
      %v617 = vpack.c.bf16 %v616, %v616
      %v618 = vld [vmem:[%s4] sm:$0xf]
      %v619 = vld [vmem:[%s4 + $0x4] sm:$0xf]
      %v620 = vld [vmem:[%s4 + $0x8] sm:$0xf]
      %v621 = vld [vmem:[%s4 + $0xc] sm:$0xf]
      %v622 = vld [vmem:[%s5] sm:$0x1]
      %v624 = vlaneseq
      %v625 = vshrl.u32 %v624, 7
      %v626 = vsub.s32 0, %v625
      %v627 = vrot.slane %v622, %v626
      %v633 = vunpack.c.l.b16 %v618
      %v634 = vunpack.c.l.b16 %v619
      %v635 = vunpack.c.l.b16 %v620
      %v636 = vunpack.c.l.b16 %v621
      %v637 = vpack.c.b16 %v634, %v633
      %v638 = vpack.c.b16 %v636, %v635
      %v642 = vsel %vm568, %v617, 0
      %644 = vmatprep.subr.bf16.mxu0 0
      %645 = vmatpush1.bf16.msra.mxu0 %v637
      %646 = vmatprep.subr.bf16.mxu0 0
      %647 = vmatpush1.bf16.msra.mxu0 %v638
      %648 = vmatprep.subr.bf16.mxu0 0
      %649 = vmatpush1.bf16.msra.mxu0 0
      %650 = vmatprep.subr.bf16.mxu0 0
      %651 = vmatpush1.bf16.msra.mxu0 0
      %652 = vmatprep.subr.bf16.mxu0 0
      %653 = vmatpush1.bf16.msra.mxu0 0
      %654 = vmatprep.subr.bf16.mxu0 0
      %655 = vmatpush1.bf16.msra.mxu0 0
      %656 = vmatprep.subr.bf16.mxu0 0
      %657 = vmatpush1.bf16.msra.mxu0 0
      %658 = vmatprep.subr.bf16.mxu0 0
      %659 = vmatpush1.bf16.msra.mxu0 0
      %660 = vmatprep.subr.bf16.mxu0 0
      %661 = vmatpush1.bf16.msra.mxu0 0
      %662 = vmatprep.subr.bf16.mxu0 0
      %663 = vmatpush1.bf16.msra.mxu0 0
      %664 = vmatprep.subr.bf16.mxu0 0
      %665 = vmatpush1.bf16.msra.mxu0 0
      %666 = vmatprep.subr.bf16.mxu0 0
      %667 = vmatpush1.bf16.msra.mxu0 0
      %668 = vmatprep.subr.bf16.mxu0 0
      %669 = vmatpush1.bf16.msra.mxu0 0
      %670 = vmatprep.subr.bf16.mxu0 0
      %671 = vmatpush1.bf16.msra.mxu0 0
      %672 = vmatprep.subr.bf16.mxu0 0
      %673 = vmatpush1.bf16.msra.mxu0 0
      %674 = vmatprep.subr.bf16.mxu0 0
      %675 = vmatpush1.bf16.msra.mxu0 0
      %676 = vmatprep.mubr.bf16.mxu0 0
      %677 = vmatmul.mubr.bf16.gmra.mrb[0].mxu0 %v642
      %v678 = vpop.f32.mrb[0].mxu0
      %v679 = vadd.f32 %v627, %v678
      %v680 = vpop.f32.mrb[0].mxu0
      %v681 = vpop.f32.mrb[0].mxu0
      %v682 = vpop.f32.mrb[0].mxu0
      %683 = vdwg.mxu0
      %v684 = vmul.f32 %v679, 0.5
      %v685 = vmul.f32 %v679, 0.70710677
      %v686 = verf.f32.pop %v685
      %v687 = vadd.f32 %v686, 1.0
      %v688 = vmul.f32 %v684, %v687
      %vm689 = vcmask 130048
      %690 = vst.msk [vmem:[%s251] sm:$0xff] %vm689, %v688
      %p691 = scmp.lt.s32.totalorder %s17, 2
      %s692 = scalar_select %p691, %s17, 2
      %s693 = smul.addr %s692, 8
      %s694 = scalar_lea.vmem %s6, %s693
      // Predicated region
      $region45: #{tpu_custom_call.1} parent=43 // pred_check
        %p695 = pneg %p166
      $region46: #{tpu_custom_call.1} parent=43 // pred_check_branch
        %697 = sbr.rel (%p695) target = $region48
      $region47: #{tpu_custom_call.1} parent=43 // pred_region
        _
      $region48: #{tpu_custom_call.1} parent=43 // pred_fallthru
        _
    $region44: #{tpu_custom_call.1} parent=5 // pred_fallthru
      _
    %p698 = scmp.le.s32.totalorder 2, %s12
    // Predicated region
    $region49: #{tpu_custom_call.1} parent=5 // pred_check
      %p699 = pneg %p698
    $region50: #{tpu_custom_call.1} parent=5 // pred_check_branch
      %701 = sbr.rel (%p699) target = $region52
    $region51: #{tpu_custom_call.1} parent=5 // pred_region
      %s702 = ssub.s32 %s12, 2
      // Predicated region
      $region53: #{tpu_custom_call.1} parent=51 // pred_check
        %p703 = pneg %p172
      $region54: #{tpu_custom_call.1} parent=51 // pred_check_branch
        %705 = sbr.rel (%p703) target = $region56
      $region55: #{tpu_custom_call.1} parent=51 // pred_region
        %p706 = scmp.lt.s32.totalorder %s18, 2
        %s707 = scalar_select %p706, %s18, 2
        %s708 = smul.addr %s707, 8
        %s709 = scalar_lea.vmem %s6, %s708
      $region56: #{tpu_custom_call.1} parent=51 // pred_fallthru
        _
    $region52: #{tpu_custom_call.1} parent=5 // pred_fallthru
      _
  $region6: #{tpu_custom_call.1} parent=0 // loop_footer
    %s16 = sadd.s32 1, %s12
  $region7: #{tpu_custom_call.1} parent=0 // loop_footer_branch
    %11 = sbr.rel target = $region3
  $region8: #{tpu_custom_call.1} parent=0 // loop_exit
    _

</llo_original>
